<compile_context>
chip_gen: v5e
topology: v5e:2x2
jax: 0.10.0
libtpu: 0.0.40
codegen_flags: <defaults>
</compile_context>

<pallas_src>
import functools

import jax
import jax.numpy as jnp
from jax import lax
from jax.experimental import pallas as pl
from jax.experimental.pallas import tpu as pltpu

IGNORE_INDEX = -100
BOS_ID, EOS_ID, PAD_ID = 1, 2, 0


def _cdiv(a, b):
    return -(-a // b)


def _round_up(x, m):
    return _cdiv(x, m) * m


def _logprob_kernel(logits_ref, labels_ref, out_ref, m_scr, l_scr, g_scr,
                    *, v_total, mask_vocab):
    """One (batch, q-tile, vocab-tile) grid step of the per-token log-prob.

    logits_ref: (1, tq, tv)  native dtype (bf16/f32) — cast to f32 per tile
    labels_ref: (1, tq, 1)   int32 (already shifted; -100 = ignore / pad)
    out_ref:    (1, tq, 1)   float32 (written only on the last vocab tile)
    m_scr/l_scr/g_scr: (tq, 1) f32 scratch — running max / sum-exp / gathered logit
    """
    ki = pl.program_id(2)

    @pl.when(ki == 0)
    def _init():
        m_scr[...] = jnp.full_like(m_scr, -jnp.inf)
        l_scr[...] = jnp.zeros_like(l_scr)
        g_scr[...] = jnp.zeros_like(g_scr)

    x = logits_ref[0].astype(jnp.float32)          # (tq, tv)
    lab = labels_ref[0]                            # (tq, 1) int32
    tv = x.shape[-1]

    # Vocab ids for this tile: lane-axis iota + tile offset; broadcast over sublanes.
    vocab_ids = lax.broadcasted_iota(jnp.int32, (1, tv), 1) + ki * tv  # (1, tv)

    if mask_vocab:  # static: only emitted when V % tv != 0 (partial last vocab tile)
        x = jnp.where(vocab_ids < v_total, x, -jnp.inf)

    # ---- online logsumexp over the vocab (lane) axis ----
    m_prev = m_scr[...]                                             # (tq, 1)
    m_new = jnp.maximum(m_prev, jnp.max(x, axis=-1, keepdims=True))
    l_scr[...] = (l_scr[...] * jnp.exp(m_prev - m_new)
                  + jnp.sum(jnp.exp(x - m_new), axis=-1, keepdims=True))
    m_scr[...] = m_new

    # ---- gather the RAW logit of the label (label hits exactly one vocab tile;
    #      labels == -100 never match a vocab id, so they contribute 0) ----
    g_scr[...] += jnp.sum(jnp.where(vocab_ids == lab, x, 0.0),
                          axis=-1, keepdims=True)

    @pl.when(ki == pl.num_programs(2) - 1)
    def _finalize():
        mask = (lab != IGNORE_INDEX).astype(jnp.float32)            # (tq, 1)
        per_token = g_scr[...] - (m_scr[...] + jnp.log(l_scr[...]))
        out_ref[...] = (per_token * mask)[None]


def compute_log_probs(logits: jnp.ndarray, labels: jnp.ndarray,
                      *, tq_max: int = 256, tv_max: int = 2048) -> jnp.ndarray:
    """Pallas equivalent of ReferenceModelWrapper._compute_log_probs.

    logits: (B, T, V) float (bf16 or f32; streamed in native dtype),
    labels: (B, T) int (-100 = ignore).
    Returns (B, T-1) float32 per-token log-probs, zeroed where label == -100.

    Default tiles (tq=256, tv=2048) are v7x-safe (64 MiB VMEM, 2 TCs); on
    v6e/v5e (128 MiB VMEM) pass tv_max=8192..16384 for better HBM utilization.
    """
    B, T, V = logits.shape
    Tm1 = T - 1

    # --- tile selection (multiples of (8, 128) to satisfy layout rules) ---
    tq_max = max(8, (tq_max // 8) * 8)
    tv_max = max(128, (tv_max // 128) * 128)
    tq = min(tq_max, _round_up(Tm1, 8))
    nq = _cdiv(Tm1, tq)
    tq_pad = nq * tq
    tv = V if V <= tv_max else tv_max
    nk = _cdiv(V, tv)
    mask_vocab = (V % tv) != 0

    # --- host-side prep: only the tiny labels array is shifted / padded ---
    labels_shifted = labels[:, 1:].astype(jnp.int32)               # (B, Tm1)
    if tq_pad > Tm1:
        labels_shifted = jnp.pad(labels_shifted, ((0, 0), (0, tq_pad - Tm1)),
                                 constant_values=IGNORE_INDEX)
    labels_in = labels_shifted[:, :, None]                          # (B, tq_pad, 1)

    kernel = functools.partial(_logprob_kernel, v_total=V, mask_vocab=mask_vocab)

    itemsize = jnp.dtype(logits.dtype).itemsize
    cost = pl.CostEstimate(
        flops=4 * B * Tm1 * V,
        transcendentals=B * Tm1 * V,
        bytes_accessed=B * T * V * itemsize + 2 * B * tq_pad * 4,
    )

    out = pl.pallas_call(
        kernel,
        out_shape=jax.ShapeDtypeStruct((B, tq_pad, 1), jnp.float32),
        grid=(B, nq, nk),
        in_specs=[
            # Full (B, T, V) logits; blocks only ever cover rows 0..nq*tq-1,
            # so the final logits row is simply never fetched.
            pl.BlockSpec((1, tq, tv), lambda b, qi, ki: (b, qi, ki)),
            pl.BlockSpec((1, tq, 1), lambda b, qi, ki: (b, qi, 0)),
        ],
        out_specs=pl.BlockSpec((1, tq, 1), lambda b, qi, ki: (b, qi, 0)),
        scratch_shapes=[
            pltpu.VMEM((tq, 1), jnp.float32),   # running max m
            pltpu.VMEM((tq, 1), jnp.float32),   # running sum-exp l
            pltpu.VMEM((tq, 1), jnp.float32),   # gathered raw logit g
        ],
        compiler_params=pltpu.CompilerParams(
            dimension_semantics=("parallel", "parallel", "arbitrary")),
        cost_estimate=cost,
    )(logits, labels_in)

    return out[:, :Tm1, 0]                                          # (B, Tm1)


class ReferenceModelWrapperPallas:
    """Mimics ReferenceModelWrapper: precompute per-token logprobs with the
    Pallas kernel, cache them keyed by the padding-stripped token tuple, and
    forward() is a lookup + pad (host-side, no tensor math)."""

    def __init__(self, input_ids, labels, logits):
        # "Precompute" phase (stands in for _precompute_log_probs); the logits
        # play the role of reference_model(...).logits (kept in native dtype).
        per_token = jax.device_get(compute_log_probs(logits, labels))
        self.logprobs = {}
        for ids_row, lp_row in zip(jax.device_get(input_ids).tolist(),
                                   per_token.tolist()):
            self.logprobs[tuple(self._remove_padding(ids_row))] = lp_row

    @staticmethod
    def _remove_padding(token_ids):
        return [t for t in token_ids if t not in (BOS_ID, PAD_ID, EOS_ID)]

    def forward(self, input_ids):
        # TODO(synk): dict lookup + pad_sequence are inherently host-side;
        # kept in Python (no Pallas equivalent).
        rows = [jnp.asarray(self.logprobs[tuple(self._remove_padding(k))],
                            dtype=jnp.float32)
                for k in jax.device_get(input_ids).tolist()]
        max_len = max(int(r.shape[0]) for r in rows)
        return jnp.stack(
            [jnp.pad(r, (0, max_len - int(r.shape[0]))) for r in rows], axis=0)

    __call__ = forward

    def eval(self):
        pass


if __name__ == "__main__":
    key = jax.random.PRNGKey(0)
    B, T, V = 2, 16, 256
    k1, k2 = jax.random.split(key, 2)

    # Synthetic deterministic "reference model" logits.
    logits = jax.random.normal(k1, (B, T, V), dtype=jnp.float32)

    # Token ids: [BOS, content..., EOS, PAD]
    content = jax.random.randint(k2, (B, T - 3), 3, V).astype(jnp.int32)
    input_ids = jnp.concatenate(
        [jnp.full((B, 1), BOS_ID, jnp.int32),
         content,
         jnp.full((B, 1), EOS_ID, jnp.int32),
         jnp.full((B, 1), PAD_ID, jnp.int32)], axis=1)            # (B, T)

    # Labels: -100 on prompt / trailing pad positions.
    prompt_len = 3
    pos = jnp.arange(T)[None, :]
    label_mask = (pos >= prompt_len) & (pos < T - 1)
    labels = jnp.where(label_mask, input_ids, IGNORE_INDEX).astype(jnp.int32)

    # Pure-JAX reference of _compute_log_probs.
    lab = labels[:, 1:]
    msk = (lab != IGNORE_INDEX)
    lab_c = jnp.where(msk, lab, 0)
    lps = jax.nn.log_softmax(logits[:, :-1, :].astype(jnp.float32), axis=-1)
    ref = jnp.take_along_axis(lps, lab_c[..., None], axis=-1)[..., 0] * msk

    # 1) Tiled path: multiple q tiles and vocab tiles (online logsumexp).
    out_tiled = jax.block_until_ready(
        compute_log_probs(logits, labels, tq_max=8, tv_max=128))
    assert out_tiled.shape == (B, T - 1)
    assert jnp.allclose(out_tiled, ref, atol=2e-5, rtol=2e-5)

    # 2) Default tiles (single block at these toy shapes).
    out_default = jax.block_until_ready(compute_log_probs(logits, labels))
    assert jnp.allclose(out_default, ref, atol=2e-5, rtol=2e-5)

    # 3) bf16 logits stream (halved HBM traffic); compare vs bf16-cast reference.
    logits_bf16 = logits.astype(jnp.bfloat16)
    lps_bf16 = jax.nn.log_softmax(
        logits_bf16[:, :-1, :].astype(jnp.float32), axis=-1)
    ref_bf16 = jnp.take_along_axis(lps_bf16, lab_c[..., None], axis=-1)[..., 0] * msk
    out_bf16 = jax.block_until_ready(
        compute_log_probs(logits_bf16, labels, tq_max=8, tv_max=128))
    assert jnp.allclose(out_bf16, ref_bf16, atol=1e-4, rtol=1e-4)

    # 4) Full wrapper path (precompute + cached lookup).
    wrapper = ReferenceModelWrapperPallas(input_ids, labels, logits)
    out_wrapped = jax.block_until_ready(wrapper(input_ids))          # (B, T-1)
    assert out_wrapped.shape == (B, T - 1)
    assert jnp.allclose(out_wrapped, ref, atol=2e-5, rtol=2e-5)

    print("KERNEL_OK")
</pallas_src>

<mosaic_0001>
module attributes {stable_mosaic.version = 11 : i64} {
  func.func @_logprob_kernel(%arg0: i32, %arg1: i32, %arg2: i32, %arg3: memref<1x8x128xf32, #tpu.memory_space<vmem>>, %arg4: memref<1x8x1xi32, #tpu.memory_space<vmem>>, %arg5: memref<1x8x1xf32, #tpu.memory_space<vmem>>, %arg6: memref<8x1xf32, #tpu.memory_space<vmem>>, %arg7: memref<8x1xf32, #tpu.memory_space<vmem>>, %arg8: memref<8x1xf32, #tpu.memory_space<vmem>>) attributes {dimension_semantics = [#tpu.dimension_semantics<parallel>, #tpu.dimension_semantics<parallel>, #tpu.dimension_semantics<arbitrary>], iteration_bounds = array<i64: 2, 2, 2>, scalar_prefetch = 0 : i64, scratch_operands = 3 : i64, tpu.core_type = #tpu.core_type<tc>, window_params = [{transform_indices = @transform_0, window_bounds = array<i64: 1, 8, 128>}, {transform_indices = @transform_1, window_bounds = array<i64: 1, 8, 1>}, {transform_indices = @transform_2, window_bounds = array<i64: 1, 8, 1>}]} {
    %c0_i32 = arith.constant 0 : i32
    %0 = arith.cmpi eq, %arg2, %c0_i32 : i32
    %1 = arith.extui %0 : i1 to i32
    %c0_i32_0 = arith.constant 0 : i32
    %2 = arith.cmpi ne, %1, %c0_i32_0 : i32
    scf.if %2 {
      %cst_22 = arith.constant 0xFF800000 : f32
      %40 = vector.broadcast %cst_22 : f32 to vector<8x1xf32>
      %c0_23 = arith.constant 0 : index
      %c0_24 = arith.constant 0 : index
      %41 = vector.load %arg6[%c0_23, %c0_24] : memref<8x1xf32, #tpu.memory_space<vmem>>, vector<8x1xf32>
      tpu.vector_store %arg6[%c0_23, %c0_24], %40 {strides = array<i32>} : memref<8x1xf32, #tpu.memory_space<vmem>>, vector<8x1xf32>,
      %cst_25 = arith.constant 0.000000e+00 : f32
      %42 = vector.broadcast %cst_25 : f32 to vector<8x1xf32>
      %c0_26 = arith.constant 0 : index
      %c0_27 = arith.constant 0 : index
      %43 = vector.load %arg7[%c0_26, %c0_27] : memref<8x1xf32, #tpu.memory_space<vmem>>, vector<8x1xf32>
      tpu.vector_store %arg7[%c0_26, %c0_27], %42 {strides = array<i32>} : memref<8x1xf32, #tpu.memory_space<vmem>>, vector<8x1xf32>,
      %cst_28 = arith.constant 0.000000e+00 : f32
      %44 = vector.broadcast %cst_28 : f32 to vector<8x1xf32>
      %c0_29 = arith.constant 0 : index
      %c0_30 = arith.constant 0 : index
      %45 = vector.load %arg8[%c0_29, %c0_30] : memref<8x1xf32, #tpu.memory_space<vmem>>, vector<8x1xf32>
      tpu.vector_store %arg8[%c0_29, %c0_30], %44 {strides = array<i32>} : memref<8x1xf32, #tpu.memory_space<vmem>>, vector<8x1xf32>,
    } else {
    }
    %c0 = arith.constant 0 : index
    %c0_1 = arith.constant 0 : index
    %c0_2 = arith.constant 0 : index
    %3 = vector.load %arg3[%c0, %c0_1, %c0_2] : memref<1x8x128xf32, #tpu.memory_space<vmem>>, vector<1x8x128xf32>
    %4 = vector.shape_cast %3 : vector<1x8x128xf32> to vector<8x128xf32>
    %c0_3 = arith.constant 0 : index
    %c0_4 = arith.constant 0 : index
    %c0_5 = arith.constant 0 : index
    %5 = vector.load %arg4[%c0_3, %c0_4, %c0_5] : memref<1x8x1xi32, #tpu.memory_space<vmem>>, vector<1x8x1xi32>
    %6 = vector.shape_cast %5 : vector<1x8x1xi32> to vector<8x1xi32>
    %7 = tpu.iota {dimensions = array<i32: 1>} : vector<1x128xi32>
    %c128_i32 = arith.constant 128 : i32
    %8 = arith.muli %arg2, %c128_i32 : i32
    %9 = vector.broadcast %8 : i32 to vector<1x128xi32>
    %10 = arith.addi %7, %9 : vector<1x128xi32>
    %c0_6 = arith.constant 0 : index
    %c0_7 = arith.constant 0 : index
    %11 = vector.load %arg6[%c0_6, %c0_7] : memref<8x1xf32, #tpu.memory_space<vmem>>, vector<8x1xf32>
    %cst = arith.constant dense<0xFF800000> : vector<8xf32>
    %12 = vector.multi_reduction <maximumf>, %4, %cst [1] : vector<8x128xf32> to vector<8xf32>
    %13 = vector.shape_cast %12 : vector<8xf32> to vector<8x1xf32>
    %14 = arith.maximumf %11, %13 : vector<8x1xf32>
    %c0_8 = arith.constant 0 : index
    %c0_9 = arith.constant 0 : index
    %15 = vector.load %arg7[%c0_8, %c0_9] : memref<8x1xf32, #tpu.memory_space<vmem>>, vector<8x1xf32>
    %16 = arith.subf %11, %14 : vector<8x1xf32>
    %17 = math.exp %16 : vector<8x1xf32>
    %18 = arith.mulf %15, %17 : vector<8x1xf32>
    %19 = vector.broadcast %14 : vector<8x1xf32> to vector<8x128xf32>
    %20 = arith.subf %4, %19 : vector<8x128xf32>
    %21 = math.exp %20 : vector<8x128xf32>
    %cst_10 = arith.constant dense<0.000000e+00> : vector<8xf32>
    %22 = vector.multi_reduction <add>, %21, %cst_10 [1] : vector<8x128xf32> to vector<8xf32>
    %23 = vector.shape_cast %22 : vector<8xf32> to vector<8x1xf32>
    %24 = arith.addf %18, %23 : vector<8x1xf32>
    %c0_11 = arith.constant 0 : index
    %c0_12 = arith.constant 0 : index
    %25 = vector.load %arg7[%c0_11, %c0_12] : memref<8x1xf32, #tpu.memory_space<vmem>>, vector<8x1xf32>
    tpu.vector_store %arg7[%c0_11, %c0_12], %24 {strides = array<i32>} : memref<8x1xf32, #tpu.memory_space<vmem>>, vector<8x1xf32>,
    %c0_13 = arith.constant 0 : index
    %c0_14 = arith.constant 0 : index
    %26 = vector.load %arg6[%c0_13, %c0_14] : memref<8x1xf32, #tpu.memory_space<vmem>>, vector<8x1xf32>
    tpu.vector_store %arg6[%c0_13, %c0_14], %14 {strides = array<i32>} : memref<8x1xf32, #tpu.memory_space<vmem>>, vector<8x1xf32>,
    %c0_15 = arith.constant 0 : index
    %c0_16 = arith.constant 0 : index
    %27 = vector.load %arg8[%c0_15, %c0_16] : memref<8x1xf32, #tpu.memory_space<vmem>>, vector<8x1xf32>
    %28 = vector.broadcast %10 : vector<1x128xi32> to vector<8x128xi32>
    %29 = vector.broadcast %6 : vector<8x1xi32> to vector<8x128xi32>
    %30 = arith.cmpi eq, %28, %29 : vector<8x128xi32>
    %cst_17 = arith.constant 0.000000e+00 : f32
    %31 = vector.broadcast %cst_17 : f32 to vector<8x128xf32>
    %32 = arith.select %30, %4, %31 : vector<8x128xi1>, vector<8x128xf32>
    %cst_18 = arith.constant dense<0.000000e+00> : vector<8xf32>
    %33 = vector.multi_reduction <add>, %32, %cst_18 [1] : vector<8x128xf32> to vector<8xf32>
    %34 = vector.shape_cast %33 : vector<8xf32> to vector<8x1xf32>
    %35 = arith.addf %27, %34 : vector<8x1xf32>
    %c0_19 = arith.constant 0 : index
    %c0_20 = arith.constant 0 : index
    %36 = vector.load %arg8[%c0_19, %c0_20] : memref<8x1xf32, #tpu.memory_space<vmem>>, vector<8x1xf32>
    tpu.vector_store %arg8[%c0_19, %c0_20], %35 {strides = array<i32>} : memref<8x1xf32, #tpu.memory_space<vmem>>, vector<8x1xf32>,
    %c1_i32 = arith.constant 1 : i32
    %37 = arith.cmpi eq, %arg2, %c1_i32 : i32
    %38 = arith.extui %37 : i1 to i32
    %c0_i32_21 = arith.constant 0 : i32
    %39 = arith.cmpi ne, %38, %c0_i32_21 : i32
    scf.if %39 {
      %c-100_i32 = arith.constant -100 : i32
      %40 = vector.broadcast %c-100_i32 : i32 to vector<8x1xi32>
      %41 = arith.cmpi ne, %6, %40 : vector<8x1xi32>
      %42 = arith.extui %41 : vector<8x1xi1> to vector<8x1xi32>
      %43 = arith.sitofp %42 : vector<8x1xi32> to vector<8x1xf32>
      %c0_22 = arith.constant 0 : index
      %c0_23 = arith.constant 0 : index
      %44 = vector.load %arg8[%c0_22, %c0_23] : memref<8x1xf32, #tpu.memory_space<vmem>>, vector<8x1xf32>
      %c0_24 = arith.constant 0 : index
      %c0_25 = arith.constant 0 : index
      %45 = vector.load %arg6[%c0_24, %c0_25] : memref<8x1xf32, #tpu.memory_space<vmem>>, vector<8x1xf32>
      %c0_26 = arith.constant 0 : index
      %c0_27 = arith.constant 0 : index
      %46 = vector.load %arg7[%c0_26, %c0_27] : memref<8x1xf32, #tpu.memory_space<vmem>>, vector<8x1xf32>
      %47 = math.log %46 : vector<8x1xf32>
      %48 = arith.addf %45, %47 : vector<8x1xf32>
      %49 = arith.subf %44, %48 : vector<8x1xf32>
      %50 = arith.mulf %49, %43 : vector<8x1xf32>
      %51 = vector.shape_cast %50 : vector<8x1xf32> to vector<1x8x1xf32>
      %c0_28 = arith.constant 0 : index
      %c0_29 = arith.constant 0 : index
      %c0_30 = arith.constant 0 : index
      %52 = vector.load %arg5[%c0_28, %c0_29, %c0_30] : memref<1x8x1xf32, #tpu.memory_space<vmem>>, vector<1x8x1xf32>
      tpu.vector_store %arg5[%c0_28, %c0_29, %c0_30], %51 {strides = array<i32>} : memref<1x8x1xf32, #tpu.memory_space<vmem>>, vector<1x8x1xf32>,
    } else {
    }
    return
  }
  func.func @transform_0(%arg0: i32, %arg1: i32, %arg2: i32) -> (i32, i32, i32) {
    %c0_i32 = arith.constant 0 : i32
    return %arg0, %arg1, %arg2 : i32, i32, i32
  }
  func.func @transform_1(%arg0: i32, %arg1: i32, %arg2: i32) -> (i32, i32, i32) {
    %c0_i32 = arith.constant 0 : i32
    %c0_i32_0 = arith.constant 0 : i32
    return %arg0, %arg1, %c0_i32 : i32, i32, i32
  }
  func.func @transform_2(%arg0: i32, %arg1: i32, %arg2: i32) -> (i32, i32, i32) {
    %c0_i32 = arith.constant 0 : i32
    %c0_i32_0 = arith.constant 0 : i32
    return %arg0, %arg1, %c0_i32 : i32, i32, i32
  }
}

</mosaic_0001>

<llo_original>
// kernel: tpu_custom_call.1
$region0: #{tpu_custom_call.1}
  #allocation0 [shape = 'u32[]', space=smem, size = 0x4, offset = 0x4, fixed_abs, tag = 'smem constant byte address 0x4 - core index']
  #allocation1 [shape = 'u32[72,128]{1,0:T(1,128)}', space=vmem, size = 0x9000, scoped, tag = 'internal scratch']
  #allocation2 [shape = 'f32[8,1]{1,0:T(8,128)}', space=vmem, size = 0x1000, scoped, tag = 'scratch operand']
  #allocation3 [shape = 'f32[8,1]{1,0:T(8,128)}', space=vmem, size = 0x1000, scoped, tag = 'scratch operand']
  #allocation4 [shape = 'f32[8,1]{1,0:T(8,128)}', space=vmem, size = 0x1000, scoped, tag = 'scratch operand']
  %s0 = inlined_call_operand.hbm [shape: f32[2,16,256], index: 0, kind: input, shape index: {}]
  %s1 = inlined_call_operand.vmem [shape: s32[2,16,1], index: 1, kind: input, shape index: {}]
  %s2 = inlined_call_operand.vmem [shape: f32[2,16,1], index: 2, kind: output, shape index: {}]
  %s3 = sld [smem:[#allocation0]]
  $region53: #{tpu_custom_call.1} parent=0
    _
  %s5 = ssub.s32 1, %s3
  %s6 = scalar_select 0, %s5, %s3
  $region1: #{tpu_custom_call.1} parent=0
    #allocation5 [shape = 'u8[8192]{0}', space=vmem, size = 0x2000, scoped, tag = 'input window, operand 0']
    #allocation6 [shape = 's32[2]{0}', space=sflag, size = 0x8, scoped, tag = 'scoped memory for tpu_custom_call.1']
    %7 = vsyncpa [#allocation6], 0
    %s8 = scalar_lea.sflag [#allocation6], 1
    %9 = vsyncpa %s8, 0
    loop: start=0, step=1, limit=10
    $region2: #{tpu_custom_call.1} parent=1 // loop_pre_header
      _
    $region3: #{tpu_custom_call.1} parent=1 // loop_header
      %s11 = sphi 0, %s15
      %p12 = scmp.ge.s32.totalorder %s11, 10
      %s18 = sphi 0, %s37
      %s19 = sphi 0, %s33
      %s20 = sphi 0, %s29
      %s21 = sphi 0, %s18
      %s22 = sphi 0, %s19
      %s23 = sphi 0, %s20
      %s24 = sphi 0, %s21
      %s25 = sphi 0, %s22
      %s26 = sphi 0, %s23
      %s44 = sphi 0, %s46
      %s47 = sphi 0, %s44
      %s48 = sphi 0, %s47
      %s64 = sphi 0, %s48
      %s72 = sphi 0, %s74
      %s75 = sphi 0, %s72
      %s76 = sphi 0, %s75
      %s92 = sphi 0, %s76
      %s100 = sphi 0, %s102
      %s103 = sphi 0, %s100
      %s104 = sphi 0, %s103
      %s120 = sphi 0, %s104
    $region4: #{tpu_custom_call.1} parent=1 // loop_header_branch
      %14 = sbr.rel (%p12) target = $region8
    $region5: #{tpu_custom_call.1} parent=1 // loop_body
      %s16 = ssub.s32 %s11, 1
      %s17 = ssub.s32 %s11, 2
      %s27 = sadd.s32 1, %s20
      %p28 = scmp.ge.s32.totalorder %s27, 2
      %s29 = scalar_select %p28, 0, %s27
      %s30 = sadd.s32 1, %s19
      %s31 = scalar_select %p28, %s30, %s19
      %p32 = scmp.ge.s32.totalorder %s31, 2
      %s33 = scalar_select %p32, 0, %s31
      %s34 = sadd.s32 1, %s18
      %s35 = scalar_select %p32, %s34, %s18
      %p36 = scmp.ge.s32.totalorder %s35, 2
      %s37 = scalar_select %p36, 0, %s35
      %s38 = ssub.s32 %s18, %s37
      %s39 = ssub.s32 %s19, %s33
      %s40 = sor.u32 %s38, %s39
      %s41 = ssub.s32 %s20, %s29
      %s42 = sor.u32 %s40, %s41
      %p43 = scmp.eq.s32.totalorder %s42, 0
      %s45 = sadd.s32 %s44, 1
      %s46 = scalar_select %p43, %s44, %s45
      %p49 = pneg %p43
      %p50 = scmp.eq.s32.totalorder %s11, 7
      %p51 = por %p49, %p50
      %p52 = scmp.ne.s32.totalorder %s44, %s47
      %p53 = scmp.eq.s32.totalorder %s11, 0
      %p54 = por %p52, %p53
      %p55 = scmp.ne.s32.totalorder %s44, %s47
      %p56 = scmp.eq.s32.totalorder %s16, 7
      %p57 = por %p55, %p56
      %p58 = scmp.ne.s32.totalorder %s47, %s48
      %p59 = scmp.eq.s32.totalorder %s16, 0
      %p60 = por %p58, %p59
      %p61 = scmp.ne.s32.totalorder %s47, %s48
      %p62 = scmp.eq.s32.totalorder %s17, 7
      %p63 = por %p61, %p62
      %p65 = scmp.ne.s32.totalorder %s48, %s64
      %p66 = scmp.eq.s32.totalorder %s17, 0
      %p67 = por %p65, %p66
      %s68 = ssub.s32 %s18, %s37
      %s69 = ssub.s32 %s19, %s33
      %s70 = sor.u32 %s68, %s69
      %p71 = scmp.eq.s32.totalorder %s70, 0
      %s73 = sadd.s32 %s72, 1
      %s74 = scalar_select %p71, %s72, %s73
      %p77 = pneg %p71
      %p78 = scmp.eq.s32.totalorder %s11, 7
      %p79 = por %p77, %p78
      %p80 = scmp.ne.s32.totalorder %s72, %s75
      %p81 = scmp.eq.s32.totalorder %s11, 0
      %p82 = por %p80, %p81
      %p83 = scmp.ne.s32.totalorder %s72, %s75
      %p84 = scmp.eq.s32.totalorder %s16, 7
      %p85 = por %p83, %p84
      %p86 = scmp.ne.s32.totalorder %s75, %s76
      %p87 = scmp.eq.s32.totalorder %s16, 0
      %p88 = por %p86, %p87
      %p89 = scmp.ne.s32.totalorder %s75, %s76
      %p90 = scmp.eq.s32.totalorder %s17, 7
      %p91 = por %p89, %p90
      %p93 = scmp.ne.s32.totalorder %s76, %s92
      %p94 = scmp.eq.s32.totalorder %s17, 0
      %p95 = por %p93, %p94
      %s96 = ssub.s32 %s18, %s37
      %s97 = ssub.s32 %s19, %s33
      %s98 = sor.u32 %s96, %s97
      %p99 = scmp.eq.s32.totalorder %s98, 0
      %s101 = sadd.s32 %s100, 1
      %s102 = scalar_select %p99, %s100, %s101
      %p105 = pneg %p99
      %p106 = scmp.eq.s32.totalorder %s11, 7
      %p107 = por %p105, %p106
      %p108 = scmp.ne.s32.totalorder %s100, %s103
      %p109 = scmp.eq.s32.totalorder %s11, 0
      %p110 = por %p108, %p109
      %p111 = scmp.ne.s32.totalorder %s100, %s103
      %p112 = scmp.eq.s32.totalorder %s16, 7
      %p113 = por %p111, %p112
      %p114 = scmp.ne.s32.totalorder %s103, %s104
      %p115 = scmp.eq.s32.totalorder %s16, 0
      %p116 = por %p114, %p115
      %p117 = scmp.ne.s32.totalorder %s103, %s104
      %p118 = scmp.eq.s32.totalorder %s17, 7
      %p119 = por %p117, %p118
      %p121 = scmp.ne.s32.totalorder %s104, %s120
      %p122 = scmp.eq.s32.totalorder %s17, 0
      %p123 = por %p121, %p122
      %p124 = scmp.le.s32.totalorder 1, %s11
      %p125 = scmp.lt.s32.totalorder %s11, 9
      %p126 = pnand %p124, %p125
      %p127 = pneg %p126
      // Predicated region
      $region9: #{tpu_custom_call.1} parent=5 // pred_check
        _
      $region10: #{tpu_custom_call.1} parent=5 // pred_check_branch
        %129 = sbr.rel (%p126) target = $region12
      $region11: #{tpu_custom_call.1} parent=5 // pred_region
        %s130 = ssub.s32 %s11, 1
      $region12: #{tpu_custom_call.1} parent=5 // pred_fallthru
        _
      %p131 = scmp.lt.s32.totalorder %s11, 8
      // Predicated region
      $region13: #{tpu_custom_call.1} parent=5 // pred_check
        %p132 = pneg %p131
      $region14: #{tpu_custom_call.1} parent=5 // pred_check_branch
        %134 = sbr.rel (%p132) target = $region16
      $region15: #{tpu_custom_call.1} parent=5 // pred_region
        // Predicated region
        $region17: #{tpu_custom_call.1} parent=15 // pred_check
          %p135 = pneg %p54
        $region18: #{tpu_custom_call.1} parent=15 // pred_check_branch
          %137 = sbr.rel (%p135) target = $region20
        $region19: #{tpu_custom_call.1} parent=15 // pred_region
          %s138 = sand.u32 %s44, 1
          %s139 = scalar_lea.sflag [#allocation6], %s138
          %s140 = sand.u32 %s44, 1
          %s141 = smul.addr %s140, 8
          %s142 = scalar_lea.vmem [#allocation5], %s141
          %144 = vsyncadd %s139, 0
          %s145 = smul.addr %s19, 2
          %s146 = sadd.s32 %s20, %s145
          %s147 = smul.addr %s18, 4
          %s148 = sadd.s32 %s146, %s147
          %s149 = smul.addr %s148, 8
          %s150 = scalar_lea.hbm %s0, %s149
          %s152 = sshll.u32 %s150, 4
          %s153 = int_to_ptr.hbm [resolvable:$true] %s152
          %s154 = sshll.u32 %s142, 4
          %s155 = int_to_ptr.vmem [resolvable:$true] %s154
          %157 = dma.hbm_to_vmem [thread:$0]  %s153, 128, %s155, %s139
        $region20: #{tpu_custom_call.1} parent=15 // pred_fallthru
          _
        // Predicated region
        $region21: #{tpu_custom_call.1} parent=15 // pred_check
          %p158 = pneg %p82
        $region22: #{tpu_custom_call.1} parent=15 // pred_check_branch
          %160 = sbr.rel (%p158) target = $region24
        $region23: #{tpu_custom_call.1} parent=15 // pred_region
          %p161 = scmp.lt.s32.totalorder %s18, 1
          %s162 = scalar_select %p161, %s18, 1
          %p163 = scmp.lt.s32.totalorder %s19, 1
          %s164 = scalar_select %p163, %s19, 1
          %s165 = smul.addr %s162, 2
          %s166 = sadd.s32 %s164, %s165
          %s167 = smul.addr %s166, 8
          %s168 = scalar_lea.vmem %s1, %s167
        $region24: #{tpu_custom_call.1} parent=15 // pred_fallthru
          _
      $region16: #{tpu_custom_call.1} parent=5 // pred_fallthru
        _
      %p169 = scmp.le.s32.totalorder 1, %s11
      %p170 = scmp.lt.s32.totalorder %s11, 9
      %p171 = pnand %p169, %p170
      %p172 = pneg %p171
      // Predicated region
      $region25: #{tpu_custom_call.1} parent=5 // pred_check
        _
      $region26: #{tpu_custom_call.1} parent=5 // pred_check_branch
        %174 = sbr.rel (%p171) target = $region28
      $region27: #{tpu_custom_call.1} parent=5 // pred_region
        %s175 = ssub.s32 %s11, 1
        %s176 = sand.u32 %s47, 1
        %s177 = scalar_lea.sflag [#allocation6], %s176
        %s178 = sand.u32 %s47, 1
        %s179 = smul.addr %s178, 8
        %s180 = scalar_lea.vmem [#allocation5], %s179
        // Predicated region
        $region29: #{tpu_custom_call.1} parent=27 // pred_check
          %p181 = pneg %p60
        $region30: #{tpu_custom_call.1} parent=27 // pred_check_branch
          %183 = sbr.rel (%p181) target = $region32
        $region31: #{tpu_custom_call.1} parent=27 // pred_region
          %185 = dma.done %s177, 128
        $region32: #{tpu_custom_call.1} parent=27 // pred_fallthru
          _
        %s186 = sand.u32 %s47, 1
        %s187 = scalar_lea.sflag [#allocation6], %s186
        %s188 = sand.u32 %s47, 1
        %s189 = smul.addr %s188, 8
        %s190 = scalar_lea.vmem [#allocation5], %s189
        %p191 = pneg %p60
        %p192 = pneg %p57
        %p193 = scmp.lt.s32.totalorder %s21, 1
        %s194 = scalar_select %p193, %s21, 1
        %p195 = scmp.lt.s32.totalorder %s22, 1
        %s196 = scalar_select %p195, %s22, 1
        %s197 = smul.addr %s194, 2
        %s198 = sadd.s32 %s196, %s197
        %s199 = smul.addr %s198, 8
        %s200 = scalar_lea.vmem %s1, %s199
        %p201 = pneg %p88
        %p202 = pneg %p85
        %p203 = pneg %p116
        %p204 = pneg %p113
        %p205 = scmp.lt.s32.totalorder %s21, 1
        %s206 = scalar_select %p205, %s21, 1
        %p207 = scmp.lt.s32.totalorder %s22, 1
        %s208 = scalar_select %p207, %s22, 1
        %s209 = smul.addr %s206, 2
        %s210 = sadd.s32 %s208, %s209
        %s211 = smul.addr %s210, 8
        %s212 = scalar_lea.vmem %s2, %s211
        %p213 = scmp.lt.s32.totalorder %s21, 1
        %s214 = scalar_select %p213, %s21, 1
        %p215 = scmp.lt.s32.totalorder %s22, 1
        %s216 = scalar_select %p215, %s22, 1
        %s217 = smul.addr %s214, 2
        %s218 = sadd.s32 %s216, %s217
        %s219 = smul.addr %s218, 8
        %s220 = scalar_lea.vmem %s1, %s219
        %p221 = scmp.lt.s32.totalorder %s21, 1
        %s222 = scalar_select %p221, %s21, 1
        %p223 = scmp.lt.s32.totalorder %s22, 1
        %s224 = scalar_select %p223, %s22, 1
        %s225 = smul.addr %s222, 2
        %s226 = sadd.s32 %s224, %s225
        %s227 = smul.addr %s226, 8
        %s228 = scalar_lea.vmem %s2, %s227
        %p229 = scmp.eq.s32.totalorder %s23, 0
        // Predicated region
        $region33: #{tpu_custom_call.1} parent=27 // pred_check
          %p230 = pneg %p229
        $region34: #{tpu_custom_call.1} parent=27 // pred_check_branch
          %232 = sbr.rel (%p230) target = $region36
        $region35: #{tpu_custom_call.1} parent=27 // pred_region
          %vm233 = vcmask 7168
          %234 = vst.msk [vmem:[#allocation2] sm:$0xff] %vm233, -inf
          %235 = vst.msk [vmem:[#allocation3] sm:$0xff] %vm233, 0.0
          %236 = vst.msk [vmem:[#allocation4] sm:$0xff] %vm233, 0.0
        $region36: #{tpu_custom_call.1} parent=27 // pred_fallthru
          _
        %v237 = vld [vmem:[%s180] sm:$0xff]
        %v238 = vld [vmem:[%s220] sm:$0xff]
        %v239 = vlaneseq
        %v240 = vand.u32 %v239, 127
        %s241 = smul.u32 %s23, 128
        %v242 = vstv %s241
        %v243 = vadd.s32 %v240, %v242
        %v244 = vld [vmem:[#allocation2] sm:$0xff]
        %245 = vmax.xlane.f32.xlu0 %v237
        %v246 = vpop.xlane.xlu0 %245
        %v247 = vmax.f32 %v244, %v246
        %v248 = vld [vmem:[#allocation3] sm:$0xff]
        %v249 = vsub.f32 %v244, %v247
        %v250 = vmul.f32 %v249, 1.442695
        %v251 = vpow.pop %v250
        %v252 = vmul.f32 %v248, %v251
        %254 = vset.pattern.permute.xlu0 0
        %255 = vperm.xlu0 %254, %v247
        %v256 = vpop.permute.xlu0 %255
        %v258 = vsub.f32 %v237, %v256
        %v259 = vmul.f32 %v258, 1.442695
        %v260 = vpow.pop %v259
        %261 = vadd.xlane.f32.xlu0 %v260
        %v262 = vpop.xlane.xlu0 %261
        %v263 = vadd.f32 %v252, %v262
        %vm264 = vcmask 7168
        %265 = vst.msk [vmem:[#allocation3] sm:$0xff] %vm264, %v263
        %266 = vst.msk [vmem:[#allocation2] sm:$0xff] %vm264, %v247
        %v267 = vld [vmem:[#allocation4] sm:$0xff]
        %268 = vset.pattern.permute.xlu0 0
        %269 = vperm.xlu0 %268, %v238
        %v270 = vpop.permute.xlu0 %269
        %vm271 = vcmp.eq.s32.totalorder %v243, %v270
        %v272 = vsel %vm271, %v237, 0.0
        %273 = vadd.xlane.f32.xlu0 %v272
        %v274 = vpop.xlane.xlu0 %273
        %v275 = vadd.f32 %v267, %v274
        %276 = vst.msk [vmem:[#allocation4] sm:$0xff] %vm264, %v275
        %p277 = scmp.eq.s32.totalorder %s23, 1
        // Predicated region
        $region37: #{tpu_custom_call.1} parent=27 // pred_check
          %p278 = pneg %p277
        $region38: #{tpu_custom_call.1} parent=27 // pred_check_branch
          %280 = sbr.rel (%p278) target = $region40
        $region39: #{tpu_custom_call.1} parent=27 // pred_region
          %vm281 = vcmp.ne.s32.totalorder %v238, 4294967196
          %v282 = vsel %vm281, 1, 0
          %v283 = vcvt.s32.f32 %v282
          %v284 = vld [vmem:[#allocation4] sm:$0xff]
          %v285 = vld [vmem:[#allocation2] sm:$0xff]
          %v286 = vld [vmem:[#allocation3] sm:$0xff]
          %v287 = vlog2.pop %v286
          %v288 = vmul.f32 %v287, 0.6931472
          %v289 = vadd.f32 %v285, %v288
          %v290 = vsub.f32 %v284, %v289
          %v291 = vmul.f32 %v290, %v283
          %292 = vst.msk [vmem:[%s228] sm:$0xff] %vm264, %v291
        $region40: #{tpu_custom_call.1} parent=27 // pred_fallthru
          _
        %p293 = scmp.lt.s32.totalorder %s21, 1
        %s294 = scalar_select %p293, %s21, 1
        %p295 = scmp.lt.s32.totalorder %s22, 1
        %s296 = scalar_select %p295, %s22, 1
        %s297 = smul.addr %s294, 2
        %s298 = sadd.s32 %s296, %s297
        %s299 = smul.addr %s298, 8
        %s300 = scalar_lea.vmem %s2, %s299
        // Predicated region
        $region41: #{tpu_custom_call.1} parent=27 // pred_check
          %p301 = pneg %p113
        $region42: #{tpu_custom_call.1} parent=27 // pred_check_branch
          %303 = sbr.rel (%p301) target = $region44
        $region43: #{tpu_custom_call.1} parent=27 // pred_region
          _
        $region44: #{tpu_custom_call.1} parent=27 // pred_fallthru
          _
      $region28: #{tpu_custom_call.1} parent=5 // pred_fallthru
        _
      %p304 = scmp.le.s32.totalorder 2, %s11
      // Predicated region
      $region45: #{tpu_custom_call.1} parent=5 // pred_check
        %p305 = pneg %p304
      $region46: #{tpu_custom_call.1} parent=5 // pred_check_branch
        %307 = sbr.rel (%p305) target = $region48
      $region47: #{tpu_custom_call.1} parent=5 // pred_region
        %s308 = ssub.s32 %s11, 2
        // Predicated region
        $region49: #{tpu_custom_call.1} parent=47 // pred_check
          %p309 = pneg %p119
        $region50: #{tpu_custom_call.1} parent=47 // pred_check_branch
          %311 = sbr.rel (%p309) target = $region52
        $region51: #{tpu_custom_call.1} parent=47 // pred_region
          %p312 = scmp.lt.s32.totalorder %s24, 1
          %s313 = scalar_select %p312, %s24, 1
          %p314 = scmp.lt.s32.totalorder %s25, 1
          %s315 = scalar_select %p314, %s25, 1
          %s316 = smul.addr %s313, 2
          %s317 = sadd.s32 %s315, %s316
          %s318 = smul.addr %s317, 8
          %s319 = scalar_lea.vmem %s2, %s318
        $region52: #{tpu_custom_call.1} parent=47 // pred_fallthru
          _
      $region48: #{tpu_custom_call.1} parent=5 // pred_fallthru
        _
    $region6: #{tpu_custom_call.1} parent=1 // loop_footer
      %s15 = sadd.s32 1, %s11
    $region7: #{tpu_custom_call.1} parent=1 // loop_footer_branch
      %10 = sbr.rel target = $region3
    $region8: #{tpu_custom_call.1} parent=1 // loop_exit
      _
    %320 = vsyncpa [#allocation6], 1
    %s321 = scalar_lea.sflag [#allocation6], 1
    %322 = vsyncpa %s321, 1

</llo_original>
